<compile_context>
chip_gen: v7x
topology: tpu7x:2x2x1
jax: 0.10.0
libtpu: 0.0.40
codegen_flags: <defaults>
</compile_context>

<pallas_src>
import math

import jax
import jax.numpy as jnp
from jax.experimental import pallas as pl
from jax.experimental.pallas import tpu as pltpu


def _vmem_limits():
    """Generation-aware (vmem_limit_bytes, tile_budget_bytes)."""
    try:
        cap = pltpu.get_tpu_info().vmem_capacity_bytes
    except Exception:  # query unavailable: assume the smallest (v7x-like) VMEM
        cap = 64 * 1024 * 1024
    if cap <= 64 * 1024 * 1024:
        # v7x: 64 MiB physical per TC — leave room for Mosaic scratch + temps.
        limit = 40 * 1024 * 1024
    else:
        # v5e/v6e: 128 MiB — bigger tiles amortize the ~0.35 us per-step cost.
        limit = min(int(cap * 0.75), 100 * 1024 * 1024)
    budget = int(limit * 0.7)
    return limit, budget


def _choose_tq(L, D, itemsize, budget_bytes):
    """Largest query-row tile whose per-step working set fits the budget.

    Per grid step:
      BlockSpec buffers (double-buffered by the Pallas pipeline):
        kT, v           : 2 * 2 * L  * D * itemsize   (resident across q tiles)
        q, out          : 2 * 2 * TQ * D * itemsize
        score, score1   : 2 * 2 * TQ * L * itemsize
      In-kernel f32 temporaries (s1 / exp / p chain + (TQ,D) accumulator):
                          ~3 * TQ * L * 4 + TQ * D * 4
    """
    fixed = 4 * L * D * itemsize
    divisors = [t for t in (1024, 512, 256, 128, 64, 32, 16, 8)
                if t <= L and L % t == 0]
    if not divisors:
        return L  # tiny / irregular L: one tile per (b, h)
    for tq in divisors:
        blockspec = fixed + 4 * tq * D * itemsize + 4 * tq * L * itemsize
        temps = 3 * tq * L * 4 + tq * D * 4
        if blockspec + temps <= budget_bytes:
            return tq
    return divisors[-1]  # smallest divisor; best effort if nothing fits budget


def _sdpa_kernel(q_ref, kt_ref, v_ref, out_ref, score_ref, score1_ref):
    # One grid step = one (batch, head, q-row-tile).  Ref shapes:
    #   q_ref / out_ref        : (1, 1, TQ, D)
    #   kt_ref                 : (1, 1, D,  L)   (same block across q tiles -> no re-DMA)
    #   v_ref                  : (1, 1, L,  D)   (same block across q tiles -> no re-DMA)
    #   score_ref / score1_ref : (1, 1, TQ, L)
    q = q_ref[0, 0]            # (TQ, D)
    kt = kt_ref[0, 0]          # (D, L)  -- K pre-transposed in the wrapper
    v = v_ref[0, 0]            # (L, D)

    inv_sqrt_d = 1.0 / math.sqrt(q.shape[-1])

    # score1 = q @ k^T / sqrt(d): plain (TQ,D)x(D,L) MXU matmul, f32 accumulate.
    s1 = jnp.dot(q, kt, preferred_element_type=jnp.float32) * inv_sqrt_d

    # Store the logits immediately to shorten the live range of the f32 temp.
    score1_ref[0, 0] = s1.astype(score1_ref.dtype)

    # Numerically stable softmax over the key axis (matches nn.Softmax(dim=-1)).
    m = jnp.max(s1, axis=-1, keepdims=True)
    p = jnp.exp(s1 - m)
    # Exact reciprocal keeps parity with the reference at 1e-5; approx=True
    # would move the divide fully onto the EUP at ~1e-3 relative error.
    p = p * pl.reciprocal(jnp.sum(p, axis=-1, keepdims=True), approx=False)
    score_ref[0, 0] = p.astype(score_ref.dtype)

    # out = score @ v  (MXU, f32 accumulate).
    o = jnp.dot(p.astype(v.dtype), v, preferred_element_type=jnp.float32)
    out_ref[0, 0] = o.astype(out_ref.dtype)


def scale_dot_product_attention(q, k, v):
    """q, k, v: (B, H, L, D). Returns (out, score, score1) like the PyTorch module."""
    B, H, L, D = q.shape
    assert k.shape == (B, H, L, D) and v.shape == (B, H, L, D)
    # TODO(synk): mask != None branch of the reference is broken (uses `score`
    # before assignment); only the mask=None path is implemented here.

    out_dtype = q.dtype
    itemsize = jnp.dtype(q.dtype).itemsize

    vmem_limit, tile_budget = _vmem_limits()
    tq = _choose_tq(L, D, itemsize, tile_budget)
    assert L % tq == 0, f"query tile {tq} must divide sequence length {L}"
    num_q = L // tq

    # One XLA transpose per call so the kernel never relayouts K per q tile.
    kt = jnp.swapaxes(k, 2, 3)                       # (B, H, D, L)

    q_spec = pl.BlockSpec((1, 1, tq, D), lambda b, h, qi: (b, h, qi, 0))
    kt_spec = pl.BlockSpec((1, 1, D, L), lambda b, h, qi: (b, h, 0, 0))
    v_spec = pl.BlockSpec((1, 1, L, D), lambda b, h, qi: (b, h, 0, 0))
    ll_spec = pl.BlockSpec((1, 1, tq, L), lambda b, h, qi: (b, h, qi, 0))

    cost = pl.CostEstimate(
        flops=4 * B * H * L * L * D,                       # two L^2*D matmuls
        transcendentals=B * H * L * L,                     # exp per logit
        bytes_accessed=(4 * B * H * L * D + 2 * B * H * L * L) * itemsize,
    )

    out, score, score1 = pl.pallas_call(
        _sdpa_kernel,
        out_shape=(
            jax.ShapeDtypeStruct((B, H, L, D), out_dtype),   # out    = score @ v
            jax.ShapeDtypeStruct((B, H, L, L), out_dtype),   # score  = softmax(score1)
            jax.ShapeDtypeStruct((B, H, L, L), out_dtype),   # score1 = q @ k^T / sqrt(d)
        ),
        grid_spec=pltpu.PrefetchScalarGridSpec(
            num_scalar_prefetch=0,
            grid=(B, H, num_q),          # q-row tiles innermost: K/V stay resident
            in_specs=[q_spec, kt_spec, v_spec],
            out_specs=[q_spec, ll_spec, ll_spec],
        ),
        compiler_params=pltpu.CompilerParams(
            # q-tile axis "arbitrary": a v7x megacore split lands on B/H and
            # keeps the constant K/V index_map residency intact (no-op on 1-TC
            # v5e/v6e chips).
            dimension_semantics=("parallel", "parallel", "arbitrary"),
            vmem_limit_bytes=vmem_limit,
        ),
        cost_estimate=cost,
    )(q, kt, v)
    return out, score, score1


def _reference(q, k, v):
    d = k.shape[-1]
    s1 = jnp.einsum("bhqd,bhkd->bhqk", q, k) / math.sqrt(d)
    p = jax.nn.softmax(s1, axis=-1)
    o = jnp.einsum("bhqk,bhkd->bhqd", p, v)
    return o, p, s1


if __name__ == "__main__":
    B, H, L, D = 2, 4, 8, 32
    key = jax.random.PRNGKey(0)
    kq, kk, kv = jax.random.split(key, 3)
    q = jax.random.normal(kq, (B, H, L, D), dtype=jnp.float32)
    k = jax.random.normal(kk, (B, H, L, D), dtype=jnp.float32)
    v = jax.random.normal(kv, (B, H, L, D), dtype=jnp.float32)

    out, score, score1 = scale_dot_product_attention(q, k, v)
    jax.block_until_ready((out, score, score1))

    ro, rp, rs1 = _reference(q, k, v)
    assert jnp.allclose(out, ro, atol=1e-5), "output mismatch"
    assert jnp.allclose(score, rp, atol=1e-5), "softmax mismatch"
    assert jnp.allclose(score1, rs1, atol=1e-5), "score1 mismatch"

    print("KERNEL_OK")
</pallas_src>

<mosaic_0001>
module attributes {stable_mosaic.version = 11 : i64} {
  func.func @_sdpa_kernel(%arg0: i32, %arg1: i32, %arg2: i32, %arg3: memref<1x1x8x32xf32, #tpu.memory_space<vmem>>, %arg4: memref<1x1x32x8xf32, #tpu.memory_space<vmem>>, %arg5: memref<1x1x8x32xf32, #tpu.memory_space<vmem>>, %arg6: memref<1x1x8x32xf32, #tpu.memory_space<vmem>>, %arg7: memref<1x1x8x8xf32, #tpu.memory_space<vmem>>, %arg8: memref<1x1x8x8xf32, #tpu.memory_space<vmem>>) attributes {dimension_semantics = [#tpu.dimension_semantics<parallel>, #tpu.dimension_semantics<parallel>, #tpu.dimension_semantics<arbitrary>], iteration_bounds = array<i64: 2, 4, 1>, scalar_prefetch = 0 : i64, scratch_operands = 0 : i64, tpu.core_type = #tpu.core_type<tc>, window_params = [{transform_indices = @transform_0, window_bounds = array<i64: 1, 1, 8, 32>}, {transform_indices = @transform_1, window_bounds = array<i64: 1, 1, 32, 8>}, {transform_indices = @transform_2, window_bounds = array<i64: 1, 1, 8, 32>}, {transform_indices = @transform_3, window_bounds = array<i64: 1, 1, 8, 32>}, {transform_indices = @transform_4, window_bounds = array<i64: 1, 1, 8, 8>}, {transform_indices = @transform_5, window_bounds = array<i64: 1, 1, 8, 8>}]} {
    %c0 = arith.constant 0 : index
    %c0_0 = arith.constant 0 : index
    %c0_1 = arith.constant 0 : index
    %c0_2 = arith.constant 0 : index
    %0 = vector.load %arg3[%c0, %c0_0, %c0_1, %c0_2] : memref<1x1x8x32xf32, #tpu.memory_space<vmem>>, vector<1x1x8x32xf32>
    %1 = vector.shape_cast %0 : vector<1x1x8x32xf32> to vector<8x32xf32>
    %c0_3 = arith.constant 0 : index
    %c0_4 = arith.constant 0 : index
    %c0_5 = arith.constant 0 : index
    %c0_6 = arith.constant 0 : index
    %2 = vector.load %arg4[%c0_3, %c0_4, %c0_5, %c0_6] : memref<1x1x32x8xf32, #tpu.memory_space<vmem>>, vector<1x1x32x8xf32>
    %3 = vector.shape_cast %2 : vector<1x1x32x8xf32> to vector<32x8xf32>
    %c0_7 = arith.constant 0 : index
    %c0_8 = arith.constant 0 : index
    %c0_9 = arith.constant 0 : index
    %c0_10 = arith.constant 0 : index
    %4 = vector.load %arg5[%c0_7, %c0_8, %c0_9, %c0_10] : memref<1x1x8x32xf32, #tpu.memory_space<vmem>>, vector<1x1x8x32xf32>
    %5 = vector.shape_cast %4 : vector<1x1x8x32xf32> to vector<8x32xf32>
    %cst = arith.constant dense<0.000000e+00> : vector<8x8xf32>
    %6 = tpu.matmul %1, %3, %cst {dimension_numbers = #tpu.dot_dimension_numbers<[1], [0], [0], [1], [0, 0, 1, 1], [], []>} : vector<8x32xf32>, vector<32x8xf32>, vector<8x8xf32> -> vector<8x8xf32>
    %cst_11 = arith.constant 0.176776692 : f32
    %7 = vector.broadcast %cst_11 : f32 to vector<8x8xf32>
    %8 = arith.mulf %6, %7 : vector<8x8xf32>
    %c0_12 = arith.constant 0 : index
    %c0_13 = arith.constant 0 : index
    %c0_14 = arith.constant 0 : index
    %c0_15 = arith.constant 0 : index
    %9 = vector.load %arg8[%c0_12, %c0_13, %c0_14, %c0_15] : memref<1x1x8x8xf32, #tpu.memory_space<vmem>>, vector<1x1x8x8xf32>
    %10 = vector.shape_cast %9 : vector<1x1x8x8xf32> to vector<8x8xf32>
    %11 = vector.shape_cast %8 : vector<8x8xf32> to vector<1x1x8x8xf32>
    tpu.vector_store %arg8[%c0_12, %c0_13, %c0_14, %c0_15], %11 {strides = array<i32>} : memref<1x1x8x8xf32, #tpu.memory_space<vmem>>, vector<1x1x8x8xf32>,
    %cst_16 = arith.constant dense<0xFF800000> : vector<8xf32>
    %12 = vector.multi_reduction <maximumf>, %8, %cst_16 [1] : vector<8x8xf32> to vector<8xf32>
    %13 = vector.shape_cast %12 : vector<8xf32> to vector<8x1xf32>
    %14 = vector.broadcast %13 : vector<8x1xf32> to vector<8x8xf32>
    %15 = arith.subf %8, %14 : vector<8x8xf32>
    %16 = math.exp %15 : vector<8x8xf32>
    %cst_17 = arith.constant dense<0.000000e+00> : vector<8xf32>
    %17 = vector.multi_reduction <add>, %16, %cst_17 [1] : vector<8x8xf32> to vector<8xf32>
    %18 = vector.shape_cast %17 : vector<8xf32> to vector<8x1xf32>
    %19 = tpu.reciprocal %18 : vector<8x1xf32> -> vector<8x1xf32>
    %20 = vector.broadcast %19 : vector<8x1xf32> to vector<8x8xf32>
    %21 = arith.mulf %16, %20 : vector<8x8xf32>
    %c0_18 = arith.constant 0 : index
    %c0_19 = arith.constant 0 : index
    %c0_20 = arith.constant 0 : index
    %c0_21 = arith.constant 0 : index
    %22 = vector.load %arg7[%c0_18, %c0_19, %c0_20, %c0_21] : memref<1x1x8x8xf32, #tpu.memory_space<vmem>>, vector<1x1x8x8xf32>
    %23 = vector.shape_cast %22 : vector<1x1x8x8xf32> to vector<8x8xf32>
    %24 = vector.shape_cast %21 : vector<8x8xf32> to vector<1x1x8x8xf32>
    tpu.vector_store %arg7[%c0_18, %c0_19, %c0_20, %c0_21], %24 {strides = array<i32>} : memref<1x1x8x8xf32, #tpu.memory_space<vmem>>, vector<1x1x8x8xf32>,
    %cst_22 = arith.constant dense<0.000000e+00> : vector<8x32xf32>
    %25 = tpu.matmul %21, %5, %cst_22 {dimension_numbers = #tpu.dot_dimension_numbers<[1], [0], [0], [1], [0, 0, 1, 1], [], []>} : vector<8x8xf32>, vector<8x32xf32>, vector<8x32xf32> -> vector<8x32xf32>
    %c0_23 = arith.constant 0 : index
    %c0_24 = arith.constant 0 : index
    %c0_25 = arith.constant 0 : index
    %c0_26 = arith.constant 0 : index
    %26 = vector.load %arg6[%c0_23, %c0_24, %c0_25, %c0_26] : memref<1x1x8x32xf32, #tpu.memory_space<vmem>>, vector<1x1x8x32xf32>
    %27 = vector.shape_cast %26 : vector<1x1x8x32xf32> to vector<8x32xf32>
    %28 = vector.shape_cast %25 : vector<8x32xf32> to vector<1x1x8x32xf32>
    tpu.vector_store %arg6[%c0_23, %c0_24, %c0_25, %c0_26], %28 {strides = array<i32>} : memref<1x1x8x32xf32, #tpu.memory_space<vmem>>, vector<1x1x8x32xf32>,
    return
  }
  func.func @transform_0(%arg0: i32, %arg1: i32, %arg2: i32) -> (i32, i32, i32, i32) {
    %c0_i32 = arith.constant 0 : i32
    %c0_i32_0 = arith.constant 0 : i32
    return %arg0, %arg1, %arg2, %c0_i32 : i32, i32, i32, i32
  }
  func.func @transform_1(%arg0: i32, %arg1: i32, %arg2: i32) -> (i32, i32, i32, i32) {
    %c0_i32 = arith.constant 0 : i32
    %c0_i32_0 = arith.constant 0 : i32
    %c0_i32_1 = arith.constant 0 : i32
    return %arg0, %arg1, %c0_i32, %c0_i32_0 : i32, i32, i32, i32
  }
  func.func @transform_2(%arg0: i32, %arg1: i32, %arg2: i32) -> (i32, i32, i32, i32) {
    %c0_i32 = arith.constant 0 : i32
    %c0_i32_0 = arith.constant 0 : i32
    %c0_i32_1 = arith.constant 0 : i32
    return %arg0, %arg1, %c0_i32, %c0_i32_0 : i32, i32, i32, i32
  }
  func.func @transform_3(%arg0: i32, %arg1: i32, %arg2: i32) -> (i32, i32, i32, i32) {
    %c0_i32 = arith.constant 0 : i32
    %c0_i32_0 = arith.constant 0 : i32
    return %arg0, %arg1, %arg2, %c0_i32 : i32, i32, i32, i32
  }
  func.func @transform_4(%arg0: i32, %arg1: i32, %arg2: i32) -> (i32, i32, i32, i32) {
    %c0_i32 = arith.constant 0 : i32
    %c0_i32_0 = arith.constant 0 : i32
    return %arg0, %arg1, %arg2, %c0_i32 : i32, i32, i32, i32
  }
  func.func @transform_5(%arg0: i32, %arg1: i32, %arg2: i32) -> (i32, i32, i32, i32) {
    %c0_i32 = arith.constant 0 : i32
    %c0_i32_0 = arith.constant 0 : i32
    return %arg0, %arg1, %arg2, %c0_i32 : i32, i32, i32, i32
  }
}

</mosaic_0001>

<llo_original>
// kernel: tpu_custom_call.1
$region0: #{tpu_custom_call.1}
  #allocation0 [shape = 'u32[]', space=smem, size = 0x4, offset = 0x4, fixed_abs, tag = 'smem constant byte address 0x4 - core index']
  #allocation1 [shape = 'u32[144,128]{1,0:T(1,128)}', space=vmem, size = 0x12000, scoped, tag = 'internal scratch']
  %s0 = inlined_call_operand.vmem [shape: f32[2,4,8,32], index: 0, kind: input, shape index: {}]
  %s1 = inlined_call_operand.vmem [shape: f32[2,4,32,8], index: 1, kind: input, shape index: {}]
  %s2 = inlined_call_operand.vmem [shape: f32[2,4,8,32], index: 2, kind: input, shape index: {}]
  %s3 = inlined_call_operand.hbm [shape: f32[2,4,8,32], index: 3, kind: output, shape index: {0}]
  %s4 = inlined_call_operand.hbm [shape: f32[2,4,8,8], index: 4, kind: output, shape index: {1}]
  %s5 = inlined_call_operand.hbm [shape: f32[2,4,8,8], index: 5, kind: output, shape index: {2}]
  %6 = xla_tuple %s3, %s4, %s5
  %s7 = sld [smem:[#allocation0]]
  $region61: #{tpu_custom_call.1} parent=0
    _
  %s9 = ssub.s32 1, %s7
  %s10 = scalar_select 0, %s9, %s7
  $region1: #{tpu_custom_call.1} parent=0
    #allocation2 [shape = 'u8[8192]{0}', space=vmem, size = 0x2000, scoped, tag = 'output window, operand 0']
    #allocation3 [shape = 's32[2]{0}', space=sflag, size = 0x8, scoped, tag = 'scoped memory for tpu_custom_call.1']
    #allocation4 [shape = 'u8[8192]{0}', space=vmem, size = 0x2000, scoped, tag = 'output window, operand 1']
    #allocation5 [shape = 's32[2]{0}', space=sflag, size = 0x8, scoped, tag = 'scoped memory for tpu_custom_call.1']
    #allocation6 [shape = 'u8[8192]{0}', space=vmem, size = 0x2000, scoped, tag = 'output window, operand 2']
    %11 = vsyncpa [#allocation3], 0
    %s12 = scalar_lea.sflag [#allocation3], 1
    %13 = vsyncpa %s12, 0
    %14 = vsyncpa [#allocation5], 0
    %s15 = scalar_lea.sflag [#allocation5], 1
    %16 = vsyncpa %s15, 0
    loop: start=0, step=1, limit=10
    $region2: #{tpu_custom_call.1} parent=1 // loop_pre_header
      _
    $region3: #{tpu_custom_call.1} parent=1 // loop_header
      %s18 = sphi 0, %s22
      %p19 = scmp.ge.s32.totalorder %s18, 10
      %s25 = sphi 0, %s44
      %s26 = sphi 0, %s40
      %s27 = sphi 0, %s36
      %s28 = sphi 0, %s25
      %s29 = sphi 0, %s26
      %s30 = sphi 0, %s27
      %s31 = sphi 0, %s28
      %s32 = sphi 0, %s29
      %s33 = sphi 0, %s30
      %s51 = sphi 0, %s53
      %s54 = sphi 0, %s51
      %s55 = sphi 0, %s54
      %s71 = sphi 0, %s55
      %s79 = sphi 0, %s81
      %s82 = sphi 0, %s79
      %s83 = sphi 0, %s82
      %s99 = sphi 0, %s83
      %s107 = sphi 0, %s109
      %s110 = sphi 0, %s107
      %s111 = sphi 0, %s110
      %s127 = sphi 0, %s111
      %s137 = sphi 0, %s139
      %s140 = sphi 0, %s137
      %s141 = sphi 0, %s140
      %s157 = sphi 0, %s141
      %s167 = sphi 0, %s169
      %s170 = sphi 0, %s167
      %s171 = sphi 0, %s170
      %s187 = sphi 0, %s171
      %s197 = sphi 0, %s199
      %s200 = sphi 0, %s197
      %s201 = sphi 0, %s200
      %s217 = sphi 0, %s201
    $region4: #{tpu_custom_call.1} parent=1 // loop_header_branch
      %21 = sbr.rel (%p19) target = $region8
    $region5: #{tpu_custom_call.1} parent=1 // loop_body
      %s23 = ssub.s32 %s18, 1
      %s24 = ssub.s32 %s18, 2
      %s34 = sadd.s32 1, %s27
      %p35 = scmp.ge.s32.totalorder %s34, 1
      %s36 = scalar_select %p35, 0, %s34
      %s37 = sadd.s32 1, %s26
      %s38 = scalar_select %p35, %s37, %s26
      %p39 = scmp.ge.s32.totalorder %s38, 4
      %s40 = scalar_select %p39, 0, %s38
      %s41 = sadd.s32 1, %s25
      %s42 = scalar_select %p39, %s41, %s25
      %p43 = scmp.ge.s32.totalorder %s42, 2
      %s44 = scalar_select %p43, 0, %s42
      %s45 = ssub.s32 %s25, %s44
      %s46 = ssub.s32 %s26, %s40
      %s47 = sor.u32 %s45, %s46
      %s48 = ssub.s32 %s27, %s36
      %s49 = sor.u32 %s47, %s48
      %p50 = scmp.eq.s32.totalorder %s49, 0
      %s52 = sadd.s32 %s51, 1
      %s53 = scalar_select %p50, %s51, %s52
      %p56 = pneg %p50
      %p57 = scmp.eq.s32.totalorder %s18, 7
      %p58 = por %p56, %p57
      %p59 = scmp.ne.s32.totalorder %s51, %s54
      %p60 = scmp.eq.s32.totalorder %s18, 0
      %p61 = por %p59, %p60
      %p62 = scmp.ne.s32.totalorder %s51, %s54
      %p63 = scmp.eq.s32.totalorder %s23, 7
      %p64 = por %p62, %p63
      %p65 = scmp.ne.s32.totalorder %s54, %s55
      %p66 = scmp.eq.s32.totalorder %s23, 0
      %p67 = por %p65, %p66
      %p68 = scmp.ne.s32.totalorder %s54, %s55
      %p69 = scmp.eq.s32.totalorder %s24, 7
      %p70 = por %p68, %p69
      %p72 = scmp.ne.s32.totalorder %s55, %s71
      %p73 = scmp.eq.s32.totalorder %s24, 0
      %p74 = por %p72, %p73
      %s75 = ssub.s32 %s25, %s44
      %s76 = ssub.s32 %s26, %s40
      %s77 = sor.u32 %s75, %s76
      %p78 = scmp.eq.s32.totalorder %s77, 0
      %s80 = sadd.s32 %s79, 1
      %s81 = scalar_select %p78, %s79, %s80
      %p84 = pneg %p78
      %p85 = scmp.eq.s32.totalorder %s18, 7
      %p86 = por %p84, %p85
      %p87 = scmp.ne.s32.totalorder %s79, %s82
      %p88 = scmp.eq.s32.totalorder %s18, 0
      %p89 = por %p87, %p88
      %p90 = scmp.ne.s32.totalorder %s79, %s82
      %p91 = scmp.eq.s32.totalorder %s23, 7
      %p92 = por %p90, %p91
      %p93 = scmp.ne.s32.totalorder %s82, %s83
      %p94 = scmp.eq.s32.totalorder %s23, 0
      %p95 = por %p93, %p94
      %p96 = scmp.ne.s32.totalorder %s82, %s83
      %p97 = scmp.eq.s32.totalorder %s24, 7
      %p98 = por %p96, %p97
      %p100 = scmp.ne.s32.totalorder %s83, %s99
      %p101 = scmp.eq.s32.totalorder %s24, 0
      %p102 = por %p100, %p101
      %s103 = ssub.s32 %s25, %s44
      %s104 = ssub.s32 %s26, %s40
      %s105 = sor.u32 %s103, %s104
      %p106 = scmp.eq.s32.totalorder %s105, 0
      %s108 = sadd.s32 %s107, 1
      %s109 = scalar_select %p106, %s107, %s108
      %p112 = pneg %p106
      %p113 = scmp.eq.s32.totalorder %s18, 7
      %p114 = por %p112, %p113
      %p115 = scmp.ne.s32.totalorder %s107, %s110
      %p116 = scmp.eq.s32.totalorder %s18, 0
      %p117 = por %p115, %p116
      %p118 = scmp.ne.s32.totalorder %s107, %s110
      %p119 = scmp.eq.s32.totalorder %s23, 7
      %p120 = por %p118, %p119
      %p121 = scmp.ne.s32.totalorder %s110, %s111
      %p122 = scmp.eq.s32.totalorder %s23, 0
      %p123 = por %p121, %p122
      %p124 = scmp.ne.s32.totalorder %s110, %s111
      %p125 = scmp.eq.s32.totalorder %s24, 7
      %p126 = por %p124, %p125
      %p128 = scmp.ne.s32.totalorder %s111, %s127
      %p129 = scmp.eq.s32.totalorder %s24, 0
      %p130 = por %p128, %p129
      %s131 = ssub.s32 %s25, %s44
      %s132 = ssub.s32 %s26, %s40
      %s133 = sor.u32 %s131, %s132
      %s134 = ssub.s32 %s27, %s36
      %s135 = sor.u32 %s133, %s134
      %p136 = scmp.eq.s32.totalorder %s135, 0
      %s138 = sadd.s32 %s137, 1
      %s139 = scalar_select %p136, %s137, %s138
      %p142 = pneg %p136
      %p143 = scmp.eq.s32.totalorder %s18, 7
      %p144 = por %p142, %p143
      %p145 = scmp.ne.s32.totalorder %s137, %s140
      %p146 = scmp.eq.s32.totalorder %s18, 0
      %p147 = por %p145, %p146
      %p148 = scmp.ne.s32.totalorder %s137, %s140
      %p149 = scmp.eq.s32.totalorder %s23, 7
      %p150 = por %p148, %p149
      %p151 = scmp.ne.s32.totalorder %s140, %s141
      %p152 = scmp.eq.s32.totalorder %s23, 0
      %p153 = por %p151, %p152
      %p154 = scmp.ne.s32.totalorder %s140, %s141
      %p155 = scmp.eq.s32.totalorder %s24, 7
      %p156 = por %p154, %p155
      %p158 = scmp.ne.s32.totalorder %s141, %s157
      %p159 = scmp.eq.s32.totalorder %s24, 0
      %p160 = por %p158, %p159
      %s161 = ssub.s32 %s25, %s44
      %s162 = ssub.s32 %s26, %s40
      %s163 = sor.u32 %s161, %s162
      %s164 = ssub.s32 %s27, %s36
      %s165 = sor.u32 %s163, %s164
      %p166 = scmp.eq.s32.totalorder %s165, 0
      %s168 = sadd.s32 %s167, 1
      %s169 = scalar_select %p166, %s167, %s168
      %p172 = pneg %p166
      %p173 = scmp.eq.s32.totalorder %s18, 7
      %p174 = por %p172, %p173
      %p175 = scmp.ne.s32.totalorder %s167, %s170
      %p176 = scmp.eq.s32.totalorder %s18, 0
      %p177 = por %p175, %p176
      %p178 = scmp.ne.s32.totalorder %s167, %s170
      %p179 = scmp.eq.s32.totalorder %s23, 7
      %p180 = por %p178, %p179
      %p181 = scmp.ne.s32.totalorder %s170, %s171
      %p182 = scmp.eq.s32.totalorder %s23, 0
      %p183 = por %p181, %p182
      %p184 = scmp.ne.s32.totalorder %s170, %s171
      %p185 = scmp.eq.s32.totalorder %s24, 7
      %p186 = por %p184, %p185
      %p188 = scmp.ne.s32.totalorder %s171, %s187
      %p189 = scmp.eq.s32.totalorder %s24, 0
      %p190 = por %p188, %p189
      %s191 = ssub.s32 %s25, %s44
      %s192 = ssub.s32 %s26, %s40
      %s193 = sor.u32 %s191, %s192
      %s194 = ssub.s32 %s27, %s36
      %s195 = sor.u32 %s193, %s194
      %p196 = scmp.eq.s32.totalorder %s195, 0
      %s198 = sadd.s32 %s197, 1
      %s199 = scalar_select %p196, %s197, %s198
      %p202 = pneg %p196
      %p203 = scmp.eq.s32.totalorder %s18, 7
      %p204 = por %p202, %p203
      %p205 = scmp.ne.s32.totalorder %s197, %s200
      %p206 = scmp.eq.s32.totalorder %s18, 0
      %p207 = por %p205, %p206
      %p208 = scmp.ne.s32.totalorder %s197, %s200
      %p209 = scmp.eq.s32.totalorder %s23, 7
      %p210 = por %p208, %p209
      %p211 = scmp.ne.s32.totalorder %s200, %s201
      %p212 = scmp.eq.s32.totalorder %s23, 0
      %p213 = por %p211, %p212
      %p214 = scmp.ne.s32.totalorder %s200, %s201
      %p215 = scmp.eq.s32.totalorder %s24, 7
      %p216 = por %p214, %p215
      %p218 = scmp.ne.s32.totalorder %s201, %s217
      %p219 = scmp.eq.s32.totalorder %s24, 0
      %p220 = por %p218, %p219
      %p221 = scmp.le.s32.totalorder 1, %s18
      %p222 = scmp.lt.s32.totalorder %s18, 9
      %p223 = pnand %p221, %p222
      %p224 = pneg %p223
      // Predicated region
      $region9: #{tpu_custom_call.1} parent=5 // pred_check
        _
      $region10: #{tpu_custom_call.1} parent=5 // pred_check_branch
        %226 = sbr.rel (%p223) target = $region12
      $region11: #{tpu_custom_call.1} parent=5 // pred_region
        %s227 = ssub.s32 %s18, 1
      $region12: #{tpu_custom_call.1} parent=5 // pred_fallthru
        _
      %p228 = scmp.lt.s32.totalorder %s18, 8
      // Predicated region
      $region13: #{tpu_custom_call.1} parent=5 // pred_check
        %p229 = pneg %p228
      $region14: #{tpu_custom_call.1} parent=5 // pred_check_branch
        %231 = sbr.rel (%p229) target = $region16
      $region15: #{tpu_custom_call.1} parent=5 // pred_region
        // Predicated region
        $region17: #{tpu_custom_call.1} parent=15 // pred_check
          %p232 = pneg %p61
        $region18: #{tpu_custom_call.1} parent=15 // pred_check_branch
          %234 = sbr.rel (%p232) target = $region20
        $region19: #{tpu_custom_call.1} parent=15 // pred_region
          %p235 = scmp.lt.s32.totalorder %s25, 1
          %s236 = scalar_select %p235, %s25, 1
          %p237 = scmp.lt.s32.totalorder %s26, 3
          %s238 = scalar_select %p237, %s26, 3
          %p239 = scmp.lt.s32.totalorder %s27, 0
          %s240 = scalar_select %p239, %s27, 0
          %s241 = sadd.s32 %s240, %s238
          %s242 = smul.addr %s236, 4
          %s243 = sadd.s32 %s241, %s242
          %s244 = smul.addr %s243, 8
          %s245 = scalar_lea.vmem %s0, %s244
        $region20: #{tpu_custom_call.1} parent=15 // pred_fallthru
          _
        // Predicated region
        $region21: #{tpu_custom_call.1} parent=15 // pred_check
          %p246 = pneg %p89
        $region22: #{tpu_custom_call.1} parent=15 // pred_check_branch
          %248 = sbr.rel (%p246) target = $region24
        $region23: #{tpu_custom_call.1} parent=15 // pred_region
          %p249 = scmp.lt.s32.totalorder %s25, 1
          %s250 = scalar_select %p249, %s25, 1
          %p251 = scmp.lt.s32.totalorder %s26, 3
          %s252 = scalar_select %p251, %s26, 3
          %s253 = smul.addr %s252, 4
          %s254 = smul.addr %s250, 16
          %s255 = sadd.s32 %s253, %s254
          %s256 = smul.addr %s255, 8
          %s257 = scalar_lea.vmem %s1, %s256
        $region24: #{tpu_custom_call.1} parent=15 // pred_fallthru
          _
        // Predicated region
        $region25: #{tpu_custom_call.1} parent=15 // pred_check
          %p258 = pneg %p117
        $region26: #{tpu_custom_call.1} parent=15 // pred_check_branch
          %260 = sbr.rel (%p258) target = $region28
        $region27: #{tpu_custom_call.1} parent=15 // pred_region
          %p261 = scmp.lt.s32.totalorder %s25, 1
          %s262 = scalar_select %p261, %s25, 1
          %p263 = scmp.lt.s32.totalorder %s26, 3
          %s264 = scalar_select %p263, %s26, 3
          %s265 = smul.addr %s262, 4
          %s266 = sadd.s32 %s264, %s265
          %s267 = smul.addr %s266, 8
          %s268 = scalar_lea.vmem %s2, %s267
        $region28: #{tpu_custom_call.1} parent=15 // pred_fallthru
          _
      $region16: #{tpu_custom_call.1} parent=5 // pred_fallthru
        _
      %p269 = scmp.le.s32.totalorder 1, %s18
      %p270 = scmp.lt.s32.totalorder %s18, 9
      %p271 = pnand %p269, %p270
      %p272 = pneg %p271
      // Predicated region
      $region29: #{tpu_custom_call.1} parent=5 // pred_check
        _
      $region30: #{tpu_custom_call.1} parent=5 // pred_check_branch
        %274 = sbr.rel (%p271) target = $region32
      $region31: #{tpu_custom_call.1} parent=5 // pred_region
        %s275 = ssub.s32 %s18, 1
        %p276 = scmp.lt.s32.totalorder %s28, 1
        %s277 = scalar_select %p276, %s28, 1
        %p278 = scmp.lt.s32.totalorder %s29, 3
        %s279 = scalar_select %p278, %s29, 3
        %p280 = scmp.lt.s32.totalorder %s30, 0
        %s281 = scalar_select %p280, %s30, 0
        %s282 = sadd.s32 %s281, %s279
        %s283 = smul.addr %s277, 4
        %s284 = sadd.s32 %s282, %s283
        %s285 = smul.addr %s284, 8
        %s286 = scalar_lea.vmem %s0, %s285
        %p287 = pneg %p67
        %p288 = pneg %p64
        %p289 = scmp.lt.s32.totalorder %s28, 1
        %s290 = scalar_select %p289, %s28, 1
        %p291 = scmp.lt.s32.totalorder %s29, 3
        %s292 = scalar_select %p291, %s29, 3
        %s293 = smul.addr %s292, 4
        %s294 = smul.addr %s290, 16
        %s295 = sadd.s32 %s293, %s294
        %s296 = smul.addr %s295, 8
        %s297 = scalar_lea.vmem %s1, %s296
        %p298 = pneg %p95
        %p299 = pneg %p92
        %p300 = scmp.lt.s32.totalorder %s28, 1
        %s301 = scalar_select %p300, %s28, 1
        %p302 = scmp.lt.s32.totalorder %s29, 3
        %s303 = scalar_select %p302, %s29, 3
        %s304 = smul.addr %s301, 4
        %s305 = sadd.s32 %s303, %s304
        %s306 = smul.addr %s305, 8
        %s307 = scalar_lea.vmem %s2, %s306
        %p308 = pneg %p123
        %p309 = pneg %p120
        %p310 = pneg %p153
        %p311 = pneg %p150
        %s312 = sand.u32 %s140, 1
        %s313 = scalar_lea.sflag [#allocation3], %s312
        %s314 = sand.u32 %s140, 1
        %s315 = smul.addr %s314, 8
        %s316 = scalar_lea.vmem [#allocation2], %s315
        %p317 = pneg %p183
        %p318 = pneg %p180
        %s319 = sand.u32 %s23, 1
        %s320 = scalar_lea.sflag [#allocation5], %s319
        %s321 = sand.u32 %s170, 1
        %s322 = smul.addr %s321, 8
        %s323 = scalar_lea.vmem [#allocation4], %s322
        %p324 = pneg %p213
        %p325 = pneg %p210
        %s326 = sand.u32 %s23, 1
        %s327 = scalar_lea.sflag [#allocation5], %s326
        %s328 = sand.u32 %s200, 1
        %s329 = smul.addr %s328, 8
        %s330 = scalar_lea.vmem [#allocation6], %s329
        %p331 = scmp.lt.s32.totalorder %s28, 1
        %s332 = scalar_select %p331, %s28, 1
        %p333 = scmp.lt.s32.totalorder %s29, 3
        %s334 = scalar_select %p333, %s29, 3
        %p335 = scmp.lt.s32.totalorder %s30, 0
        %s336 = scalar_select %p335, %s30, 0
        %s337 = sadd.s32 %s336, %s334
        %s338 = smul.addr %s332, 4
        %s339 = sadd.s32 %s337, %s338
        %s340 = smul.addr %s339, 8
        %s341 = scalar_lea.vmem %s0, %s340
        %p342 = scmp.lt.s32.totalorder %s28, 1
        %s343 = scalar_select %p342, %s28, 1
        %p344 = scmp.lt.s32.totalorder %s29, 3
        %s345 = scalar_select %p344, %s29, 3
        %s346 = smul.addr %s345, 4
        %s347 = smul.addr %s343, 16
        %s348 = sadd.s32 %s346, %s347
        %s349 = smul.addr %s348, 8
        %s350 = scalar_lea.vmem %s1, %s349
        %p351 = scmp.lt.s32.totalorder %s28, 1
        %s352 = scalar_select %p351, %s28, 1
        %p353 = scmp.lt.s32.totalorder %s29, 3
        %s354 = scalar_select %p353, %s29, 3
        %s355 = smul.addr %s352, 4
        %s356 = sadd.s32 %s354, %s355
        %s357 = smul.addr %s356, 8
        %s358 = scalar_lea.vmem %s2, %s357
        %v359 = vld [vmem:[%s341] sm:$0xff]
        %v360 = vld [vmem:[%s350] sm:$0xff]
        %v361 = vld [vmem:[%s350 + $0x8] sm:$0xff]
        %v362 = vld [vmem:[%s350 + $0x10] sm:$0xff]
        %v363 = vld [vmem:[%s350 + $0x18] sm:$0xff]
        %v364 = vld [vmem:[%s358] sm:$0xff]
        %vm365 = vcmask 261120
        %v367 = vsel %vm365, %v359, 0
        %369 = vmatprep.subr.mxu0 0.0
        %370 = vmatpush1.msra.mxu0 %v360
        %371 = vmatprep.subr.mxu0 0.0
        %372 = vmatpush1.msra.mxu0 %v361
        %373 = vmatprep.subr.mxu0 0.0
        %374 = vmatpush1.msra.mxu0 %v362
        %375 = vmatprep.subr.mxu0 0.0
        %376 = vmatpush1.msra.mxu0 %v363
        %377 = vmatprep.subr.mxu0 0.0
        %378 = vmatpush1.msra.mxu0 0.0
        %379 = vmatprep.subr.mxu0 0.0
        %380 = vmatpush1.msra.mxu0 0.0
        %381 = vmatprep.subr.mxu0 0.0
        %382 = vmatpush1.msra.mxu0 0.0
        %383 = vmatprep.subr.mxu0 0.0
        %384 = vmatpush1.msra.mxu0 0.0
        %385 = vmatprep.subr.mxu0 0.0
        %386 = vmatpush1.msra.mxu0 0.0
        %387 = vmatprep.subr.mxu0 0.0
        %388 = vmatpush1.msra.mxu0 0.0
        %389 = vmatprep.subr.mxu0 0.0
        %390 = vmatpush1.msra.mxu0 0.0
        %391 = vmatprep.subr.mxu0 0.0
        %392 = vmatpush1.msra.mxu0 0.0
        %393 = vmatprep.subr.mxu0 0.0
        %394 = vmatpush1.msra.mxu0 0.0
        %395 = vmatprep.subr.mxu0 0.0
        %396 = vmatpush1.msra.mxu0 0.0
        %397 = vmatprep.subr.mxu0 0.0
        %398 = vmatpush1.msra.mxu0 0.0
        %399 = vmatprep.subr.mxu0 0.0
        %400 = vmatpush1.msra.mxu0 0.0
        %401 = vmatprep.subr.mxu0 0.0
        %402 = vmatpush1.msra.mxu0 0.0
        %403 = vmatprep.subr.mxu0 0.0
        %404 = vmatpush1.msra.mxu0 0.0
        %405 = vmatprep.subr.mxu0 0.0
        %406 = vmatpush1.msra.mxu0 0.0
        %407 = vmatprep.subr.mxu0 0.0
        %408 = vmatpush1.msra.mxu0 0.0
        %409 = vmatprep.subr.mxu0 0.0
        %410 = vmatpush1.msra.mxu0 0.0
        %411 = vmatprep.subr.mxu0 0.0
        %412 = vmatpush1.msra.mxu0 0.0
        %413 = vmatprep.subr.mxu0 0.0
        %414 = vmatpush1.msra.mxu0 0.0
        %415 = vmatprep.subr.mxu0 0.0
        %416 = vmatpush1.msra.mxu0 0.0
        %417 = vmatprep.subr.mxu0 0.0
        %418 = vmatpush1.msra.mxu0 0.0
        %419 = vmatprep.subr.mxu0 0.0
        %420 = vmatpush1.msra.mxu0 0.0
        %421 = vmatprep.subr.mxu0 0.0
        %422 = vmatpush1.msra.mxu0 0.0
        %423 = vmatprep.subr.mxu0 0.0
        %424 = vmatpush1.msra.mxu0 0.0
        %425 = vmatprep.subr.mxu0 0.0
        %426 = vmatpush1.msra.mxu0 0.0
        %427 = vmatprep.subr.mxu0 0.0
        %428 = vmatpush1.msra.mxu0 0.0
        %429 = vmatprep.subr.mxu0 0.0
        %430 = vmatpush1.msra.mxu0 0.0
        %431 = vmatprep.subr.mxu0 0.0
        %432 = vmatpush1.msra.mxu0 0.0
        %433 = vmatprep.mubr.f32.mxu0 0.0
        %434 = vmatmul.mubr.f32.gmra.mrb[0].mxu0 %v367
        %v435 = vpop.f32.mrb[0].mxu0
        %v436 = vadd.f32 0.0, %v435
        %v437 = vpop.f32.mrb[0].mxu0
        %438 = vdwg.mxu0
        %v439 = vmul.f32 %v436, 0.17677669
        %vm440 = vcmask 64512
        %441 = vst.msk [vmem:[%s330] sm:$0xff] %vm440, %v439
        %v442 = vsel %vm440, %v439, -inf
        %443 = vmax.xlane.f32.xlu0 %v442
        %v444 = vpop.xlane.xlu0 %443
        %v445 = vsub.f32 %v439, %v444
        %v446 = vmul.f32 %v445, 1.442695
        %v447 = vpow.pop %v446
        %v448 = vsel %vm440, %v447, 0.0
        %449 = vadd.xlane.f32.xlu0 %v448
        %v450 = vpop.xlane.xlu0 %449
        %v451 = vrcp.pop %v450
        %v452 = vmul.f32 %v447, %v451
        %453 = vst.msk [vmem:[%s323] sm:$0xff] %vm440, %v452
        %v455 = vsel %vm440, %v452, 0
        %457 = vmatprep.subr.mxu0 0.0
        %458 = vmatpush1.msra.mxu0 %v364
        %459 = vmatprep.subr.mxu0 0.0
        %460 = vmatpush1.msra.mxu0 0.0
        %461 = vmatprep.subr.mxu0 0.0
        %462 = vmatpush1.msra.mxu0 0.0
        %463 = vmatprep.subr.mxu0 0.0
        %464 = vmatpush1.msra.mxu0 0.0
        %465 = vmatprep.subr.mxu0 0.0
        %466 = vmatpush1.msra.mxu0 0.0
        %467 = vmatprep.subr.mxu0 0.0
        %468 = vmatpush1.msra.mxu0 0.0
        %469 = vmatprep.subr.mxu0 0.0
        %470 = vmatpush1.msra.mxu0 0.0
        %471 = vmatprep.subr.mxu0 0.0
        %472 = vmatpush1.msra.mxu0 0.0
        %473 = vmatprep.subr.mxu0 0.0
        %474 = vmatpush1.msra.mxu0 0.0
        %475 = vmatprep.subr.mxu0 0.0
        %476 = vmatpush1.msra.mxu0 0.0
        %477 = vmatprep.subr.mxu0 0.0
        %478 = vmatpush1.msra.mxu0 0.0
        %479 = vmatprep.subr.mxu0 0.0
        %480 = vmatpush1.msra.mxu0 0.0
        %481 = vmatprep.subr.mxu0 0.0
        %482 = vmatpush1.msra.mxu0 0.0
        %483 = vmatprep.subr.mxu0 0.0
        %484 = vmatpush1.msra.mxu0 0.0
        %485 = vmatprep.subr.mxu0 0.0
        %486 = vmatpush1.msra.mxu0 0.0
        %487 = vmatprep.subr.mxu0 0.0
        %488 = vmatpush1.msra.mxu0 0.0
        %489 = vmatprep.subr.mxu0 0.0
        %490 = vmatpush1.msra.mxu0 0.0
        %491 = vmatprep.subr.mxu0 0.0
        %492 = vmatpush1.msra.mxu0 0.0
        %493 = vmatprep.subr.mxu0 0.0
        %494 = vmatpush1.msra.mxu0 0.0
        %495 = vmatprep.subr.mxu0 0.0
        %496 = vmatpush1.msra.mxu0 0.0
        %497 = vmatprep.subr.mxu0 0.0
        %498 = vmatpush1.msra.mxu0 0.0
        %499 = vmatprep.subr.mxu0 0.0
        %500 = vmatpush1.msra.mxu0 0.0
        %501 = vmatprep.subr.mxu0 0.0
        %502 = vmatpush1.msra.mxu0 0.0
        %503 = vmatprep.subr.mxu0 0.0
        %504 = vmatpush1.msra.mxu0 0.0
        %505 = vmatprep.subr.mxu0 0.0
        %506 = vmatpush1.msra.mxu0 0.0
        %507 = vmatprep.subr.mxu0 0.0
        %508 = vmatpush1.msra.mxu0 0.0
        %509 = vmatprep.subr.mxu0 0.0
        %510 = vmatpush1.msra.mxu0 0.0
        %511 = vmatprep.subr.mxu0 0.0
        %512 = vmatpush1.msra.mxu0 0.0
        %513 = vmatprep.subr.mxu0 0.0
        %514 = vmatpush1.msra.mxu0 0.0
        %515 = vmatprep.subr.mxu0 0.0
        %516 = vmatpush1.msra.mxu0 0.0
        %517 = vmatprep.subr.mxu0 0.0
        %518 = vmatpush1.msra.mxu0 0.0
        %519 = vmatprep.subr.mxu0 0.0
        %520 = vmatpush1.msra.mxu0 0.0
        %521 = vmatprep.mubr.f32.mxu0 0.0
        %522 = vmatmul.mubr.f32.gmra.mrb[0].mxu0 %v455
        %v523 = vpop.f32.mrb[0].mxu0
        %v524 = vadd.f32 0.0, %v523
        %v525 = vpop.f32.mrb[0].mxu0
        %526 = vdwg.mxu0
        %527 = vst.msk [vmem:[%s316] sm:$0xff] %vm365, %v524
        %s528 = sand.u32 %s140, 1
        %s529 = scalar_lea.sflag [#allocation3], %s528
        %s530 = sand.u32 %s140, 1
        %s531 = smul.addr %s530, 8
        %s532 = scalar_lea.vmem [#allocation2], %s531
        %s533 = sand.u32 %s23, 1
        %s534 = scalar_lea.sflag [#allocation5], %s533
        %s535 = sand.u32 %s170, 1
        %s536 = smul.addr %s535, 8
        %s537 = scalar_lea.vmem [#allocation4], %s536
        %s538 = sand.u32 %s23, 1
        %s539 = scalar_lea.sflag [#allocation5], %s538
        %s540 = sand.u32 %s200, 1
        %s541 = smul.addr %s540, 8
        %s542 = scalar_lea.vmem [#allocation6], %s541
        // Predicated region
        $region33: #{tpu_custom_call.1} parent=31 // pred_check
          %p543 = pneg %p150
        $region34: #{tpu_custom_call.1} parent=31 // pred_check_branch
          %545 = sbr.rel (%p543) target = $region36
        $region35: #{tpu_custom_call.1} parent=31 // pred_region
          %s547 = ssub.s32 128, 128
          %548 = vsyncadd %s529, %s547
          %s549 = sadd.s32 %s30, %s29
          %s550 = smul.addr %s28, 4
          %s551 = sadd.s32 %s549, %s550
          %s552 = smul.addr %s551, 128
          %s553 = scalar_lea.hbm %s3, %s552
          %s555 = sshll.u32 %s532, 4
          %s556 = int_to_ptr.vmem [resolvable:$true] %s555
          %558 = dma.vmem_to_hbm [thread:$0]  %s556, 128, %s553, %s529
        $region36: #{tpu_custom_call.1} parent=31 // pred_fallthru
          _
        // Predicated region
        $region37: #{tpu_custom_call.1} parent=31 // pred_check
          %p559 = pneg %p180
        $region38: #{tpu_custom_call.1} parent=31 // pred_check_branch
          %561 = sbr.rel (%p559) target = $region40
        $region39: #{tpu_custom_call.1} parent=31 // pred_region
          %s563 = ssub.s32 128, 128
          %564 = vsyncadd %s534, %s563
          %s565 = sadd.s32 %s30, %s29
          %s566 = smul.addr %s28, 4
          %s567 = sadd.s32 %s565, %s566
          %s568 = smul.addr %s567, 128
          %s569 = scalar_lea.hbm %s4, %s568
          %s571 = sshll.u32 %s537, 4
          %s572 = int_to_ptr.vmem [resolvable:$true] %s571
          %574 = dma.vmem_to_hbm [thread:$0]  %s572, 128, %s569, %s534
        $region40: #{tpu_custom_call.1} parent=31 // pred_fallthru
          _
        // Predicated region
        $region41: #{tpu_custom_call.1} parent=31 // pred_check
          %p575 = pneg %p210
        $region42: #{tpu_custom_call.1} parent=31 // pred_check_branch
          %577 = sbr.rel (%p575) target = $region44
        $region43: #{tpu_custom_call.1} parent=31 // pred_region
          %s579 = ssub.s32 128, 128
          %580 = vsyncadd %s539, %s579
          %s581 = sadd.s32 %s30, %s29
          %s582 = smul.addr %s28, 4
          %s583 = sadd.s32 %s581, %s582
          %s584 = smul.addr %s583, 128
          %s585 = scalar_lea.hbm %s5, %s584
          %s587 = sshll.u32 %s542, 4
          %s588 = int_to_ptr.vmem [resolvable:$true] %s587
          %590 = dma.vmem_to_hbm [thread:$0]  %s588, 128, %s585, %s539
        $region44: #{tpu_custom_call.1} parent=31 // pred_fallthru
          _
      $region32: #{tpu_custom_call.1} parent=5 // pred_fallthru
        _
      %p591 = scmp.le.s32.totalorder 2, %s18
      // Predicated region
      $region45: #{tpu_custom_call.1} parent=5 // pred_check
        %p592 = pneg %p591
      $region46: #{tpu_custom_call.1} parent=5 // pred_check_branch
        %594 = sbr.rel (%p592) target = $region48
      $region47: #{tpu_custom_call.1} parent=5 // pred_region
        %s595 = ssub.s32 %s18, 2
        // Predicated region
        $region49: #{tpu_custom_call.1} parent=47 // pred_check
          %p596 = pneg %p156
        $region50: #{tpu_custom_call.1} parent=47 // pred_check_branch
          %598 = sbr.rel (%p596) target = $region52
        $region51: #{tpu_custom_call.1} parent=47 // pred_region
          %s599 = sand.u32 %s141, 1
          %s600 = scalar_lea.sflag [#allocation3], %s599
          %s601 = sand.u32 %s141, 1
          %s602 = smul.addr %s601, 8
          %s603 = scalar_lea.vmem [#allocation2], %s602
          %604 = dma.done %s600, 128
        $region52: #{tpu_custom_call.1} parent=47 // pred_fallthru
          _
        // Predicated region
        $region53: #{tpu_custom_call.1} parent=47 // pred_check
          %p605 = pneg %p186
        $region54: #{tpu_custom_call.1} parent=47 // pred_check_branch
          %607 = sbr.rel (%p605) target = $region56
        $region55: #{tpu_custom_call.1} parent=47 // pred_region
          %s608 = sand.u32 %s24, 1
          %s609 = scalar_lea.sflag [#allocation5], %s608
          %s610 = sand.u32 %s171, 1
          %s611 = smul.addr %s610, 8
          %s612 = scalar_lea.vmem [#allocation4], %s611
          %613 = dma.done %s609, 128
        $region56: #{tpu_custom_call.1} parent=47 // pred_fallthru
          _
        // Predicated region
        $region57: #{tpu_custom_call.1} parent=47 // pred_check
          %p614 = pneg %p216
        $region58: #{tpu_custom_call.1} parent=47 // pred_check_branch
          %616 = sbr.rel (%p614) target = $region60
        $region59: #{tpu_custom_call.1} parent=47 // pred_region
          %s617 = sand.u32 %s24, 1
          %s618 = scalar_lea.sflag [#allocation5], %s617
          %s619 = sand.u32 %s201, 1
          %s620 = smul.addr %s619, 8
          %s621 = scalar_lea.vmem [#allocation6], %s620
          %622 = dma.done %s618, 128
        $region60: #{tpu_custom_call.1} parent=47 // pred_fallthru
          _
      $region48: #{tpu_custom_call.1} parent=5 // pred_fallthru
        _
    $region6: #{tpu_custom_call.1} parent=1 // loop_footer
      %s22 = sadd.s32 1, %s18
    $region7: #{tpu_custom_call.1} parent=1 // loop_footer_branch
      %17 = sbr.rel target = $region3
    $region8: #{tpu_custom_call.1} parent=1 // loop_exit
      _
    %623 = vsyncpa [#allocation3], 1
    %s624 = scalar_lea.sflag [#allocation3], 1
    %625 = vsyncpa %s624, 1
    %626 = vsyncpa [#allocation5], 1
    %s627 = scalar_lea.sflag [#allocation5], 1
    %628 = vsyncpa %s627, 1

</llo_original>
